<compile_context>
chip_gen: v5e
topology: v5e:2x2
jax: 0.10.0
libtpu: 0.0.40
codegen_flags: <defaults>
</compile_context>

<pallas_src>
import jax
import jax.numpy as jnp
from jax.experimental import pallas as pl
from jax.experimental.pallas import tpu as pltpu

IN_DIM, H1, H2, OUT_DIM = 28 * 28, 128, 64, 10
OUT_PAD = 128          # lane-dense padded logits width
NEG_PAD = -1e30        # pad-lane bias -> exp() underflows to exact 0
SUBLANE = 16           # bf16 sublane packing: batch tile kept a multiple of 16


def _mlp_kernel(x_ref, w1_ref, b1_ref, w2_ref, b2_ref, w3_ref, b3_ref, o_ref):
    # Full forward pass for one batch tile, all resident in VMEM.
    # x arrives f32 straight from HBM; cast to bf16 here (VPU cast hides under
    # the DMA) instead of a separate wrapper-side XLA pass.
    x = x_ref[...].astype(jnp.bfloat16)                          # (tile, 784)

    # linear1 + ReLU (f32 accumulate; back to bf16 for the next MXU pass)
    h1 = jnp.dot(x, w1_ref[...], preferred_element_type=jnp.float32) + b1_ref[...]
    h1 = jnp.maximum(h1, 0.0).astype(jnp.bfloat16)

    # linear2 + ReLU
    h2 = jnp.dot(h1, w2_ref[...], preferred_element_type=jnp.float32) + b2_ref[...]
    h2 = jnp.maximum(h2, 0.0).astype(jnp.bfloat16)

    # linear3 (lane-padded to 128 columns; pad lanes carry -1e30 logits)
    logits = jnp.dot(h2, w3_ref[...], preferred_element_type=jnp.float32) + b3_ref[...]

    # log_softmax over classes, numerically stable, in f32; store bf16.
    m = jnp.max(logits, axis=-1, keepdims=True)
    shifted = logits - m
    lse = jnp.log(jnp.sum(jnp.exp(shifted), axis=-1, keepdims=True))
    o_ref[...] = (shifted - lse).astype(o_ref.dtype)


def _pick_tile(B, batch_tile):
    # Largest multiple-of-16 tile <= batch_tile that covers B, then capped so
    # the grid has >= 2 steps when B can be split (v7x dual TensorCore).
    tile = min(batch_tile, pl.cdiv(B, SUBLANE) * SUBLANE)
    if B > SUBLANE:
        half_up = pl.cdiv(pl.cdiv(B, 2), SUBLANE) * SUBLANE
        tile = min(tile, half_up)
    return max(SUBLANE, tile)


def modelo_forward(x, params, *, batch_tile=1024):
    w1, b1, w2, b2, w3, b3 = params
    B = x.shape[0]

    tile = _pick_tile(B, batch_tile)
    grid = (pl.cdiv(B, tile),)   # ragged last block handled by Pallas masking

    # Weights are tiny; cast them (only) to bf16 in the wrapper.
    w1_bf = w1.astype(jnp.bfloat16)
    w2_bf = w2.astype(jnp.bfloat16)
    # Lane-pad the final layer to 128 outputs for an unmasked lane-dense store.
    w3_bf = jnp.pad(w3, ((0, 0), (0, OUT_PAD - OUT_DIM))).astype(jnp.bfloat16)
    b3_p = jnp.pad(b3, ((0, 0), (0, OUT_PAD - OUT_DIM)), constant_values=NEG_PAD)

    rep = lambda i: (0, 0)        # weights/biases: same full block every step
    once = pl.Buffered(1)         # grid-invariant -> single buffer suffices

    out = pl.pallas_call(
        _mlp_kernel,
        out_shape=jax.ShapeDtypeStruct((B, OUT_PAD), jnp.bfloat16),
        grid_spec=pltpu.PrefetchScalarGridSpec(
            num_scalar_prefetch=0,
            grid=grid,
            in_specs=[
                pl.BlockSpec((tile, IN_DIM), lambda i: (i, 0)),          # x tile (f32)
                pl.BlockSpec((IN_DIM, H1), rep, pipeline_mode=once),     # w1
                pl.BlockSpec((1, H1), rep, pipeline_mode=once),          # b1
                pl.BlockSpec((H1, H2), rep, pipeline_mode=once),         # w2
                pl.BlockSpec((1, H2), rep, pipeline_mode=once),          # b2
                pl.BlockSpec((H2, OUT_PAD), rep, pipeline_mode=once),    # w3 (padded)
                pl.BlockSpec((1, OUT_PAD), rep, pipeline_mode=once),     # b3 (padded)
            ],
            out_specs=pl.BlockSpec((tile, OUT_PAD), lambda i: (i, 0)),
        ),
        compiler_params=pltpu.CompilerParams(
            dimension_semantics=("parallel",),   # batch tiles shard across TCs
            vmem_limit_bytes=32 * 1024 * 1024,
        ),
    )(x, w1_bf, b1, w2_bf, b2, w3_bf, b3_p)

    return out[:, :OUT_DIM]


def init_params(key):
    # Deterministic synthetic init (torch-Linear-like uniform fan-in bounds).
    ks = jax.random.split(key, 6)

    def lin(kw, kb, fan_in, fan_out):
        bound = 1.0 / jnp.sqrt(fan_in)
        w = jax.random.uniform(kw, (fan_in, fan_out), jnp.float32, -bound, bound)
        b = jax.random.uniform(kb, (1, fan_out), jnp.float32, -bound, bound)
        return w, b

    w1, b1 = lin(ks[0], ks[1], IN_DIM, H1)
    w2, b2 = lin(ks[2], ks[3], H1, H2)
    w3, b3 = lin(ks[4], ks[5], H2, OUT_DIM)
    return (w1, b1, w2, b2, w3, b3)


def reference_forward(x, params):
    # Pure-JAX reference of the PyTorch forward, mirroring the kernel's bf16
    # matmul inputs with f32 accumulation (softmax in f32).
    w1, b1, w2, b2, w3, b3 = params
    xb = x.astype(jnp.bfloat16)
    w1b, w2b, w3b = (w.astype(jnp.bfloat16) for w in (w1, w2, w3))
    h1 = jnp.maximum(jnp.dot(xb, w1b, preferred_element_type=jnp.float32) + b1, 0.0)
    h1 = h1.astype(jnp.bfloat16)
    h2 = jnp.maximum(jnp.dot(h1, w2b, preferred_element_type=jnp.float32) + b2, 0.0)
    h2 = h2.astype(jnp.bfloat16)
    logits = jnp.dot(h2, w3b, preferred_element_type=jnp.float32) + b3
    return jax.nn.log_softmax(logits, axis=1)


def _check(out, ref):
    out_f32 = out.astype(jnp.float32)
    # bf16 output -> ~3 significant digits on the log-probs.
    assert jnp.allclose(out_f32, ref, atol=3e-2, rtol=2e-2), float(
        jnp.max(jnp.abs(out_f32 - ref))
    )


if __name__ == "__main__":
    key = jax.random.PRNGKey(0)
    k_x, k_p = jax.random.split(key)
    params = init_params(k_p)

    # Small aligned batch (tile clamps to 16 -> single grid step).
    B = 16
    x = jax.random.normal(k_x, (B, IN_DIM), jnp.float32)
    out = jax.block_until_ready(modelo_forward(x, params))
    assert out.shape == (B, OUT_DIM)
    _check(out, reference_forward(x, params))

    # Ragged batch: exercises the masked boundary block (no wrapper-side pad).
    B2 = 20
    x2 = jax.random.normal(k_x, (B2, IN_DIM), jnp.float32)
    out2 = jax.block_until_ready(modelo_forward(x2, params))
    assert out2.shape == (B2, OUT_DIM)
    _check(out2, reference_forward(x2, params))

    print("KERNEL_OK")
</pallas_src>

<mosaic_0001>
module attributes {stable_mosaic.version = 11 : i64} {
  func.func @_mlp_kernel(%arg0: i32, %arg1: memref<16x784xf32, #tpu.memory_space<vmem>>, %arg2: memref<784x128xbf16, #tpu.memory_space<vmem>>, %arg3: memref<1x128xf32, #tpu.memory_space<vmem>>, %arg4: memref<128x64xbf16, #tpu.memory_space<vmem>>, %arg5: memref<1x64xf32, #tpu.memory_space<vmem>>, %arg6: memref<64x128xbf16, #tpu.memory_space<vmem>>, %arg7: memref<1x128xf32, #tpu.memory_space<vmem>>, %arg8: memref<16x128xbf16, #tpu.memory_space<vmem>>) attributes {dimension_semantics = [#tpu.dimension_semantics<parallel>], iteration_bounds = array<i64: 1>, scalar_prefetch = 0 : i64, scratch_operands = 0 : i64, tpu.core_type = #tpu.core_type<tc>, window_params = [{transform_indices = @transform_0, window_bounds = array<i64: 16, 784>}, {pipeline_mode = #tpu.pipeline_mode<synchronous>, transform_indices = @transform_1, window_bounds = array<i64: 784, 128>}, {pipeline_mode = #tpu.pipeline_mode<synchronous>, transform_indices = @transform_2, window_bounds = array<i64: 1, 128>}, {pipeline_mode = #tpu.pipeline_mode<synchronous>, transform_indices = @transform_3, window_bounds = array<i64: 128, 64>}, {pipeline_mode = #tpu.pipeline_mode<synchronous>, transform_indices = @transform_4, window_bounds = array<i64: 1, 64>}, {pipeline_mode = #tpu.pipeline_mode<synchronous>, transform_indices = @transform_5, window_bounds = array<i64: 64, 128>}, {pipeline_mode = #tpu.pipeline_mode<synchronous>, transform_indices = @transform_6, window_bounds = array<i64: 1, 128>}, {transform_indices = @transform_7, window_bounds = array<i64: 16, 128>}]} {
    %c0 = arith.constant 0 : index
    %c0_0 = arith.constant 0 : index
    %0 = vector.load %arg1[%c0, %c0_0] : memref<16x784xf32, #tpu.memory_space<vmem>>, vector<16x784xf32>
    %1 = arith.truncf %0 : vector<16x784xf32> to vector<16x784xbf16>
    %c0_1 = arith.constant 0 : index
    %c0_2 = arith.constant 0 : index
    %2 = vector.load %arg2[%c0_1, %c0_2] : memref<784x128xbf16, #tpu.memory_space<vmem>>, vector<784x128xbf16>
    %cst = arith.constant dense<0.000000e+00> : vector<16x128xf32>
    %3 = tpu.matmul %1, %2, %cst {dimension_numbers = #tpu.dot_dimension_numbers<[1], [0], [0], [1], [0, 0, 1, 1], [], []>} : vector<16x784xbf16>, vector<784x128xbf16>, vector<16x128xf32> -> vector<16x128xf32>
    %c0_3 = arith.constant 0 : index
    %c0_4 = arith.constant 0 : index
    %4 = vector.load %arg3[%c0_3, %c0_4] : memref<1x128xf32, #tpu.memory_space<vmem>>, vector<1x128xf32>
    %5 = vector.broadcast %4 : vector<1x128xf32> to vector<16x128xf32>
    %6 = arith.addf %3, %5 : vector<16x128xf32>
    %cst_5 = arith.constant 0.000000e+00 : f32
    %7 = vector.broadcast %cst_5 : f32 to vector<16x128xf32>
    %8 = arith.maximumf %6, %7 : vector<16x128xf32>
    %9 = arith.truncf %8 : vector<16x128xf32> to vector<16x128xbf16>
    %c0_6 = arith.constant 0 : index
    %c0_7 = arith.constant 0 : index
    %10 = vector.load %arg4[%c0_6, %c0_7] : memref<128x64xbf16, #tpu.memory_space<vmem>>, vector<128x64xbf16>
    %cst_8 = arith.constant dense<0.000000e+00> : vector<16x64xf32>
    %11 = tpu.matmul %9, %10, %cst_8 {dimension_numbers = #tpu.dot_dimension_numbers<[1], [0], [0], [1], [0, 0, 1, 1], [], []>} : vector<16x128xbf16>, vector<128x64xbf16>, vector<16x64xf32> -> vector<16x64xf32>
    %c0_9 = arith.constant 0 : index
    %c0_10 = arith.constant 0 : index
    %12 = vector.load %arg5[%c0_9, %c0_10] : memref<1x64xf32, #tpu.memory_space<vmem>>, vector<1x64xf32>
    %13 = vector.broadcast %12 : vector<1x64xf32> to vector<16x64xf32>
    %14 = arith.addf %11, %13 : vector<16x64xf32>
    %cst_11 = arith.constant 0.000000e+00 : f32
    %15 = vector.broadcast %cst_11 : f32 to vector<16x64xf32>
    %16 = arith.maximumf %14, %15 : vector<16x64xf32>
    %17 = arith.truncf %16 : vector<16x64xf32> to vector<16x64xbf16>
    %c0_12 = arith.constant 0 : index
    %c0_13 = arith.constant 0 : index
    %18 = vector.load %arg6[%c0_12, %c0_13] : memref<64x128xbf16, #tpu.memory_space<vmem>>, vector<64x128xbf16>
    %cst_14 = arith.constant dense<0.000000e+00> : vector<16x128xf32>
    %19 = tpu.matmul %17, %18, %cst_14 {dimension_numbers = #tpu.dot_dimension_numbers<[1], [0], [0], [1], [0, 0, 1, 1], [], []>} : vector<16x64xbf16>, vector<64x128xbf16>, vector<16x128xf32> -> vector<16x128xf32>
    %c0_15 = arith.constant 0 : index
    %c0_16 = arith.constant 0 : index
    %20 = vector.load %arg7[%c0_15, %c0_16] : memref<1x128xf32, #tpu.memory_space<vmem>>, vector<1x128xf32>
    %21 = vector.broadcast %20 : vector<1x128xf32> to vector<16x128xf32>
    %22 = arith.addf %19, %21 : vector<16x128xf32>
    %cst_17 = arith.constant dense<0xFF800000> : vector<16xf32>
    %23 = vector.multi_reduction <maximumf>, %22, %cst_17 [1] : vector<16x128xf32> to vector<16xf32>
    %24 = vector.shape_cast %23 : vector<16xf32> to vector<16x1xf32>
    %25 = vector.broadcast %24 : vector<16x1xf32> to vector<16x128xf32>
    %26 = arith.subf %22, %25 : vector<16x128xf32>
    %27 = math.exp %26 : vector<16x128xf32>
    %cst_18 = arith.constant dense<0.000000e+00> : vector<16xf32>
    %28 = vector.multi_reduction <add>, %27, %cst_18 [1] : vector<16x128xf32> to vector<16xf32>
    %29 = vector.shape_cast %28 : vector<16xf32> to vector<16x1xf32>
    %30 = math.log %29 : vector<16x1xf32>
    %31 = vector.broadcast %30 : vector<16x1xf32> to vector<16x128xf32>
    %32 = arith.subf %26, %31 : vector<16x128xf32>
    %33 = arith.truncf %32 : vector<16x128xf32> to vector<16x128xbf16>
    %c0_19 = arith.constant 0 : index
    %c0_20 = arith.constant 0 : index
    %34 = vector.load %arg8[%c0_19, %c0_20] : memref<16x128xbf16, #tpu.memory_space<vmem>>, vector<16x128xbf16>
    tpu.vector_store %arg8[%c0_19, %c0_20], %33 {strides = array<i32>} : memref<16x128xbf16, #tpu.memory_space<vmem>>, vector<16x128xbf16>,
    return
  }
  func.func @transform_0(%arg0: i32) -> (i32, i32) {
    %c0_i32 = arith.constant 0 : i32
    %c0_i32_0 = arith.constant 0 : i32
    return %arg0, %c0_i32 : i32, i32
  }
  func.func @transform_1(%arg0: i32) -> (i32, i32) {
    %c0_i32 = arith.constant 0 : i32
    %c0_i32_0 = arith.constant 0 : i32
    %c0_i32_1 = arith.constant 0 : i32
    return %c0_i32, %c0_i32_0 : i32, i32
  }
  func.func @transform_2(%arg0: i32) -> (i32, i32) {
    %c0_i32 = arith.constant 0 : i32
    %c0_i32_0 = arith.constant 0 : i32
    %c0_i32_1 = arith.constant 0 : i32
    return %c0_i32, %c0_i32_0 : i32, i32
  }
  func.func @transform_3(%arg0: i32) -> (i32, i32) {
    %c0_i32 = arith.constant 0 : i32
    %c0_i32_0 = arith.constant 0 : i32
    %c0_i32_1 = arith.constant 0 : i32
    return %c0_i32, %c0_i32_0 : i32, i32
  }
  func.func @transform_4(%arg0: i32) -> (i32, i32) {
    %c0_i32 = arith.constant 0 : i32
    %c0_i32_0 = arith.constant 0 : i32
    %c0_i32_1 = arith.constant 0 : i32
    return %c0_i32, %c0_i32_0 : i32, i32
  }
  func.func @transform_5(%arg0: i32) -> (i32, i32) {
    %c0_i32 = arith.constant 0 : i32
    %c0_i32_0 = arith.constant 0 : i32
    %c0_i32_1 = arith.constant 0 : i32
    return %c0_i32, %c0_i32_0 : i32, i32
  }
  func.func @transform_6(%arg0: i32) -> (i32, i32) {
    %c0_i32 = arith.constant 0 : i32
    %c0_i32_0 = arith.constant 0 : i32
    %c0_i32_1 = arith.constant 0 : i32
    return %c0_i32, %c0_i32_0 : i32, i32
  }
  func.func @transform_7(%arg0: i32) -> (i32, i32) {
    %c0_i32 = arith.constant 0 : i32
    %c0_i32_0 = arith.constant 0 : i32
    return %arg0, %c0_i32 : i32, i32
  }
}

</mosaic_0001>

<llo_original>
// kernel: tpu_custom_call.1
$region0: #{tpu_custom_call.1}
  #allocation0 [shape = 'u32[]', space=smem, size = 0x4, offset = 0x4, fixed_abs, tag = 'smem constant byte address 0x4 - core index']
  #allocation1 [shape = 'u32[72,128]{1,0:T(1,128)}', space=vmem, size = 0x9000, scoped, tag = 'internal scratch']
  %s0 = inlined_call_operand.hbm [shape: f32[16,784], index: 0, kind: input, shape index: {}]
  %s1 = inlined_call_operand.hbm [shape: bf16[784,128], index: 1, kind: input, shape index: {}]
  %s2 = inlined_call_operand.vmem [shape: f32[1,128], index: 2, kind: input, shape index: {}]
  %s3 = inlined_call_operand.vmem [shape: bf16[128,64], index: 3, kind: input, shape index: {}]
  %s4 = inlined_call_operand.vmem [shape: f32[1,64], index: 4, kind: input, shape index: {}]
  %s5 = inlined_call_operand.vmem [shape: bf16[64,128], index: 5, kind: input, shape index: {}]
  %s6 = inlined_call_operand.vmem [shape: f32[1,128], index: 6, kind: input, shape index: {}]
  %s7 = inlined_call_operand.hbm [shape: bf16[16,128], index: 7, kind: output, shape index: {}]
  %s8 = sld [smem:[#allocation0]]
  $region46: #{tpu_custom_call.1} parent=0
    _
  %s10 = ssub.s32 1, %s8
  %s11 = scalar_select 0, %s10, %s8
  $region1: #{tpu_custom_call.1} parent=0
    #allocation2 [shape = 'u8[57344]{0}', space=vmem, size = 0xe000, scoped, tag = 'input window, operand 0, single buffered']
    #allocation3 [shape = 's32[1]{0}', space=sflag, size = 0x4, scoped, tag = 'scoped memory for tpu_custom_call.1']
    #allocation4 [shape = 's32[1]{0}', space=sflag, size = 0x4, scoped, tag = 'scoped memory for tpu_custom_call.1']
    #allocation5 [shape = 'u8[200704]{0}', space=vmem, size = 0x31000, scoped, tag = 'input window, operand 1, single buffered']
    #allocation6 [shape = 's32[1]{0}', space=sflag, size = 0x4, scoped, tag = 'scoped memory for tpu_custom_call.1']
    #allocation7 [shape = 'u8[4096]{0}', space=vmem, size = 0x1000, scoped, tag = 'output window, operand 0, single buffered']
    %12 = vsyncpa [#allocation3], 0
    %13 = vsyncpa [#allocation6], 0
    %14 = vsyncpa [#allocation4], 0
    // Predicated region
    $region2: #{tpu_custom_call.1} parent=1 // pred_check
      _
    $region3: #{tpu_custom_call.1} parent=1 // pred_check_branch
      %16 = sbr.rel (0) target = $region5
    $region4: #{tpu_custom_call.1} parent=1 // pred_region
      %18 = vsyncadd [#allocation3], 0
      %s19 = sshll.u32 %s0, 4
      %s20 = int_to_ptr.hbm [resolvable:$true] %s19
      %s21 = sshll.u32 [#allocation2], 4
      %s22 = int_to_ptr.vmem [resolvable:$true] %s21
      %27 = dma.hbm_to_vmem [thread:$0]  %s20, 1792, %s22, [#allocation3], 896, 896, 56
    $region5: #{tpu_custom_call.1} parent=1 // pred_fallthru
      _
    // Predicated region
    $region6: #{tpu_custom_call.1} parent=1 // pred_check
      _
    $region7: #{tpu_custom_call.1} parent=1 // pred_check_branch
      %29 = sbr.rel (0) target = $region9
    $region8: #{tpu_custom_call.1} parent=1 // pred_region
      %31 = vsyncadd [#allocation6], 0
      %s32 = sshll.u32 %s1, 4
      %s33 = int_to_ptr.hbm [resolvable:$true] %s32
      %s34 = sshll.u32 [#allocation5], 4
      %s35 = int_to_ptr.vmem [resolvable:$true] %s34
      %40 = dma.hbm_to_vmem [thread:$0]  %s33, 6272, %s35, [#allocation6], 64, 64, 4
    $region9: #{tpu_custom_call.1} parent=1 // pred_fallthru
      _
    // Predicated region
    $region10: #{tpu_custom_call.1} parent=1 // pred_check
      _
    $region11: #{tpu_custom_call.1} parent=1 // pred_check_branch
      %42 = sbr.rel (0) target = $region13
    $region12: #{tpu_custom_call.1} parent=1 // pred_region
      _
    $region13: #{tpu_custom_call.1} parent=1 // pred_fallthru
      _
    // Predicated region
    $region14: #{tpu_custom_call.1} parent=1 // pred_check
      _
    $region15: #{tpu_custom_call.1} parent=1 // pred_check_branch
      %44 = sbr.rel (0) target = $region17
    $region16: #{tpu_custom_call.1} parent=1 // pred_region
      _
    $region17: #{tpu_custom_call.1} parent=1 // pred_fallthru
      _
    // Predicated region
    $region18: #{tpu_custom_call.1} parent=1 // pred_check
      _
    $region19: #{tpu_custom_call.1} parent=1 // pred_check_branch
      %46 = sbr.rel (0) target = $region21
    $region20: #{tpu_custom_call.1} parent=1 // pred_region
      _
    $region21: #{tpu_custom_call.1} parent=1 // pred_fallthru
      _
    // Predicated region
    $region22: #{tpu_custom_call.1} parent=1 // pred_check
      _
    $region23: #{tpu_custom_call.1} parent=1 // pred_check_branch
      %48 = sbr.rel (0) target = $region25
    $region24: #{tpu_custom_call.1} parent=1 // pred_region
      _
    $region25: #{tpu_custom_call.1} parent=1 // pred_fallthru
      _
    // Predicated region
    $region26: #{tpu_custom_call.1} parent=1 // pred_check
      _
    $region27: #{tpu_custom_call.1} parent=1 // pred_check_branch
      %50 = sbr.rel (0) target = $region29
    $region28: #{tpu_custom_call.1} parent=1 // pred_region
      _
    $region29: #{tpu_custom_call.1} parent=1 // pred_fallthru
      _
    // Predicated region
    $region30: #{tpu_custom_call.1} parent=1 // pred_check
      _
    $region31: #{tpu_custom_call.1} parent=1 // pred_check_branch
      %52 = sbr.rel (0) target = $region33
    $region32: #{tpu_custom_call.1} parent=1 // pred_region
      %54 = dma.done [#allocation3], 1792
    $region33: #{tpu_custom_call.1} parent=1 // pred_fallthru
      _
    // Predicated region
    $region34: #{tpu_custom_call.1} parent=1 // pred_check
      _
    $region35: #{tpu_custom_call.1} parent=1 // pred_check_branch
      %56 = sbr.rel (0) target = $region37
    $region36: #{tpu_custom_call.1} parent=1 // pred_region
      %58 = dma.done [#allocation6], 6272
    $region37: #{tpu_custom_call.1} parent=1 // pred_fallthru
      _
    %v60 = vld [vmem:[#allocation2] sm:$0xff]
    %v61 = vld [vmem:[#allocation2 + $0x8] sm:$0xff]
    %v62 = vld [vmem:[#allocation2 + $0x10] sm:$0xff]
    %v63 = vld [vmem:[#allocation2 + $0x18] sm:$0xff]
    %v64 = vld [vmem:[#allocation2 + $0x20] sm:$0xff]
    %v65 = vld [vmem:[#allocation2 + $0x28] sm:$0xff]
    %v66 = vld [vmem:[#allocation2 + $0x30] sm:$0xff]
    %v67 = vld [vmem:[#allocation2 + $0x38] sm:$0xff]
    %v68 = vld [vmem:[#allocation2 + $0x40] sm:$0xff]
    %v69 = vld [vmem:[#allocation2 + $0x48] sm:$0xff]
    %v70 = vld [vmem:[#allocation2 + $0x50] sm:$0xff]
    %v71 = vld [vmem:[#allocation2 + $0x58] sm:$0xff]
    %v72 = vld [vmem:[#allocation2 + $0x60] sm:$0xff]
    %v73 = vld [vmem:[#allocation2 + $0x68] sm:$0xff]
    %v74 = vpack.c.bf16 %v67, %v60
    %v75 = vpack.c.bf16 %v68, %v61
    %v76 = vpack.c.bf16 %v69, %v62
    %v77 = vpack.c.bf16 %v70, %v63
    %v78 = vpack.c.bf16 %v71, %v64
    %v79 = vpack.c.bf16 %v72, %v65
    %v80 = vpack.c.bf16 %v73, %v66
    %v81 = vld [vmem:[#allocation5] sm:$0xf]
    %v82 = vld [vmem:[#allocation5 + $0x4] sm:$0xf]
    %v83 = vld [vmem:[#allocation5 + $0x8] sm:$0xf]
    %v84 = vld [vmem:[#allocation5 + $0xc] sm:$0xf]
    %v85 = vld [vmem:[#allocation5 + $0x10] sm:$0xf]
    %v86 = vld [vmem:[#allocation5 + $0x14] sm:$0xf]
    %v87 = vld [vmem:[#allocation5 + $0x18] sm:$0xf]
    %v88 = vld [vmem:[#allocation5 + $0x1c] sm:$0xf]
    %v89 = vld [vmem:[#allocation5 + $0x20] sm:$0xf]
    %v90 = vld [vmem:[#allocation5 + $0x24] sm:$0xf]
    %v91 = vld [vmem:[#allocation5 + $0x28] sm:$0xf]
    %v92 = vld [vmem:[#allocation5 + $0x2c] sm:$0xf]
    %v93 = vld [vmem:[#allocation5 + $0x30] sm:$0xf]
    %v94 = vld [vmem:[#allocation5 + $0x34] sm:$0xf]
    %v95 = vld [vmem:[#allocation5 + $0x38] sm:$0xf]
    %v96 = vld [vmem:[#allocation5 + $0x3c] sm:$0xf]
    %v97 = vld [vmem:[#allocation5 + $0x40] sm:$0xf]
    %v98 = vld [vmem:[#allocation5 + $0x44] sm:$0xf]
    %v99 = vld [vmem:[#allocation5 + $0x48] sm:$0xf]
    %v100 = vld [vmem:[#allocation5 + $0x4c] sm:$0xf]
    %v101 = vld [vmem:[#allocation5 + $0x50] sm:$0xf]
    %v102 = vld [vmem:[#allocation5 + $0x54] sm:$0xf]
    %v103 = vld [vmem:[#allocation5 + $0x58] sm:$0xf]
    %v104 = vld [vmem:[#allocation5 + $0x5c] sm:$0xf]
    %v105 = vld [vmem:[#allocation5 + $0x60] sm:$0xf]
    %v106 = vld [vmem:[#allocation5 + $0x64] sm:$0xf]
    %v107 = vld [vmem:[#allocation5 + $0x68] sm:$0xf]
    %v108 = vld [vmem:[#allocation5 + $0x6c] sm:$0xf]
    %v109 = vld [vmem:[#allocation5 + $0x70] sm:$0xf]
    %v110 = vld [vmem:[#allocation5 + $0x74] sm:$0xf]
    %v111 = vld [vmem:[#allocation5 + $0x78] sm:$0xf]
    %v112 = vld [vmem:[#allocation5 + $0x7c] sm:$0xf]
    %v113 = vld [vmem:[#allocation5 + $0x80] sm:$0xf]
    %v114 = vld [vmem:[#allocation5 + $0x84] sm:$0xf]
    %v115 = vld [vmem:[#allocation5 + $0x88] sm:$0xf]
    %v116 = vld [vmem:[#allocation5 + $0x8c] sm:$0xf]
    %v117 = vld [vmem:[#allocation5 + $0x90] sm:$0xf]
    %v118 = vld [vmem:[#allocation5 + $0x94] sm:$0xf]
    %v119 = vld [vmem:[#allocation5 + $0x98] sm:$0xf]
    %v120 = vld [vmem:[#allocation5 + $0x9c] sm:$0xf]
    %v121 = vld [vmem:[#allocation5 + $0xa0] sm:$0xf]
    %v122 = vld [vmem:[#allocation5 + $0xa4] sm:$0xf]
    %v123 = vld [vmem:[#allocation5 + $0xa8] sm:$0xf]
    %v124 = vld [vmem:[#allocation5 + $0xac] sm:$0xf]
    %v125 = vld [vmem:[#allocation5 + $0xb0] sm:$0xf]
    %v126 = vld [vmem:[#allocation5 + $0xb4] sm:$0xf]
    %v127 = vld [vmem:[#allocation5 + $0xb8] sm:$0xf]
    %v128 = vld [vmem:[#allocation5 + $0xbc] sm:$0xf]
    %v129 = vld [vmem:[#allocation5 + $0xc0] sm:$0xf]
    %v130 = vld [vmem:[#allocation5 + $0xc4] sm:$0xf]
    %v131 = vld [vmem:[#allocation5 + $0xc8] sm:$0xf]
    %v132 = vld [vmem:[#allocation5 + $0xcc] sm:$0xf]
    %v133 = vld [vmem:[#allocation5 + $0xd0] sm:$0xf]
    %v134 = vld [vmem:[#allocation5 + $0xd4] sm:$0xf]
    %v135 = vld [vmem:[#allocation5 + $0xd8] sm:$0xf]
    %v136 = vld [vmem:[#allocation5 + $0xdc] sm:$0xf]
    %v137 = vld [vmem:[#allocation5 + $0xe0] sm:$0xf]
    %v138 = vld [vmem:[#allocation5 + $0xe4] sm:$0xf]
    %v139 = vld [vmem:[#allocation5 + $0xe8] sm:$0xf]
    %v140 = vld [vmem:[#allocation5 + $0xec] sm:$0xf]
    %v141 = vld [vmem:[#allocation5 + $0xf0] sm:$0xf]
    %v142 = vld [vmem:[#allocation5 + $0xf4] sm:$0xf]
    %v143 = vld [vmem:[#allocation5 + $0xf8] sm:$0xf]
    %v144 = vld [vmem:[#allocation5 + $0xfc] sm:$0xf]
    %v145 = vld [vmem:[#allocation5 + $0x100] sm:$0xf]
    %v146 = vld [vmem:[#allocation5 + $0x104] sm:$0xf]
    %v147 = vld [vmem:[#allocation5 + $0x108] sm:$0xf]
    %v148 = vld [vmem:[#allocation5 + $0x10c] sm:$0xf]
    %v149 = vld [vmem:[#allocation5 + $0x110] sm:$0xf]
    %v150 = vld [vmem:[#allocation5 + $0x114] sm:$0xf]
    %v151 = vld [vmem:[#allocation5 + $0x118] sm:$0xf]
    %v152 = vld [vmem:[#allocation5 + $0x11c] sm:$0xf]
    %v153 = vld [vmem:[#allocation5 + $0x120] sm:$0xf]
    %v154 = vld [vmem:[#allocation5 + $0x124] sm:$0xf]
    %v155 = vld [vmem:[#allocation5 + $0x128] sm:$0xf]
    %v156 = vld [vmem:[#allocation5 + $0x12c] sm:$0xf]
    %v157 = vld [vmem:[#allocation5 + $0x130] sm:$0xf]
    %v158 = vld [vmem:[#allocation5 + $0x134] sm:$0xf]
    %v159 = vld [vmem:[#allocation5 + $0x138] sm:$0xf]
    %v160 = vld [vmem:[#allocation5 + $0x13c] sm:$0xf]
    %v161 = vld [vmem:[#allocation5 + $0x140] sm:$0xf]
    %v162 = vld [vmem:[#allocation5 + $0x144] sm:$0xf]
    %v163 = vld [vmem:[#allocation5 + $0x148] sm:$0xf]
    %v164 = vld [vmem:[#allocation5 + $0x14c] sm:$0xf]
    %v165 = vld [vmem:[#allocation5 + $0x150] sm:$0xf]
    %v166 = vld [vmem:[#allocation5 + $0x154] sm:$0xf]
    %v167 = vld [vmem:[#allocation5 + $0x158] sm:$0xf]
    %v168 = vld [vmem:[#allocation5 + $0x15c] sm:$0xf]
    %v169 = vld [vmem:[#allocation5 + $0x160] sm:$0xf]
    %v170 = vld [vmem:[#allocation5 + $0x164] sm:$0xf]
    %v171 = vld [vmem:[#allocation5 + $0x168] sm:$0xf]
    %v172 = vld [vmem:[#allocation5 + $0x16c] sm:$0xf]
    %v173 = vld [vmem:[#allocation5 + $0x170] sm:$0xf]
    %v174 = vld [vmem:[#allocation5 + $0x174] sm:$0xf]
    %v175 = vld [vmem:[#allocation5 + $0x178] sm:$0xf]
    %v176 = vld [vmem:[#allocation5 + $0x17c] sm:$0xf]
    %v177 = vld [vmem:[#allocation5 + $0x180] sm:$0xf]
    %v178 = vld [vmem:[#allocation5 + $0x184] sm:$0xf]
    %v179 = vld [vmem:[%s2] sm:$0x1]
    %v181 = vperm.slane %v179, 0
    %v281 = vunpack.c.l.b16 %v81
    %v282 = vunpack.c.l.b16 %v82
    %v283 = vunpack.c.l.b16 %v83
    %v284 = vunpack.c.l.b16 %v84
    %v285 = vunpack.c.l.b16 %v85
    %v286 = vunpack.c.l.b16 %v86
    %v287 = vunpack.c.l.b16 %v87
    %v288 = vunpack.c.l.b16 %v88
    %v289 = vunpack.c.l.b16 %v89
    %v290 = vunpack.c.l.b16 %v90
    %v291 = vunpack.c.l.b16 %v91
    %v292 = vunpack.c.l.b16 %v92
    %v293 = vunpack.c.l.b16 %v93
    %v294 = vunpack.c.l.b16 %v94
    %v295 = vunpack.c.l.b16 %v95
    %v296 = vunpack.c.l.b16 %v96
    %v297 = vunpack.c.l.b16 %v97
    %v298 = vunpack.c.l.b16 %v98
    %v299 = vunpack.c.l.b16 %v99
    %v300 = vunpack.c.l.b16 %v100
    %v301 = vunpack.c.l.b16 %v101
    %v302 = vunpack.c.l.b16 %v102
    %v303 = vunpack.c.l.b16 %v103
    %v304 = vunpack.c.l.b16 %v104
    %v305 = vunpack.c.l.b16 %v105
    %v306 = vunpack.c.l.b16 %v106
    %v307 = vunpack.c.l.b16 %v107
    %v308 = vunpack.c.l.b16 %v108
    %v309 = vunpack.c.l.b16 %v109
    %v310 = vunpack.c.l.b16 %v110
    %v311 = vunpack.c.l.b16 %v111
    %v312 = vunpack.c.l.b16 %v112
    %v313 = vunpack.c.l.b16 %v113
    %v314 = vunpack.c.l.b16 %v114
    %v315 = vunpack.c.l.b16 %v115
    %v316 = vunpack.c.l.b16 %v116
    %v317 = vunpack.c.l.b16 %v117
    %v318 = vunpack.c.l.b16 %v118
    %v319 = vunpack.c.l.b16 %v119
    %v320 = vunpack.c.l.b16 %v120
    %v321 = vunpack.c.l.b16 %v121
    %v322 = vunpack.c.l.b16 %v122
    %v323 = vunpack.c.l.b16 %v123
    %v324 = vunpack.c.l.b16 %v124
    %v325 = vunpack.c.l.b16 %v125
    %v326 = vunpack.c.l.b16 %v126
    %v327 = vunpack.c.l.b16 %v127
    %v328 = vunpack.c.l.b16 %v128
    %v329 = vunpack.c.l.b16 %v129
    %v330 = vunpack.c.l.b16 %v130
    %v331 = vunpack.c.l.b16 %v131
    %v332 = vunpack.c.l.b16 %v132
    %v333 = vunpack.c.l.b16 %v133
    %v334 = vunpack.c.l.b16 %v134
    %v335 = vunpack.c.l.b16 %v135
    %v336 = vunpack.c.l.b16 %v136
    %v337 = vunpack.c.l.b16 %v137
    %v338 = vunpack.c.l.b16 %v138
    %v339 = vunpack.c.l.b16 %v139
    %v340 = vunpack.c.l.b16 %v140
    %v341 = vunpack.c.l.b16 %v141
    %v342 = vunpack.c.l.b16 %v142
    %v343 = vunpack.c.l.b16 %v143
    %v344 = vunpack.c.l.b16 %v144
    %v345 = vunpack.c.l.b16 %v145
    %v346 = vunpack.c.l.b16 %v146
    %v347 = vunpack.c.l.b16 %v147
    %v348 = vunpack.c.l.b16 %v148
    %v349 = vunpack.c.l.b16 %v149
    %v350 = vunpack.c.l.b16 %v150
    %v351 = vunpack.c.l.b16 %v151
    %v352 = vunpack.c.l.b16 %v152
    %v353 = vunpack.c.l.b16 %v153
    %v354 = vunpack.c.l.b16 %v154
    %v355 = vunpack.c.l.b16 %v155
    %v356 = vunpack.c.l.b16 %v156
    %v357 = vunpack.c.l.b16 %v157
    %v358 = vunpack.c.l.b16 %v158
    %v359 = vunpack.c.l.b16 %v159
    %v360 = vunpack.c.l.b16 %v160
    %v361 = vunpack.c.l.b16 %v161
    %v362 = vunpack.c.l.b16 %v162
    %v363 = vunpack.c.l.b16 %v163
    %v364 = vunpack.c.l.b16 %v164
    %v365 = vunpack.c.l.b16 %v165
    %v366 = vunpack.c.l.b16 %v166
    %v367 = vunpack.c.l.b16 %v167
    %v368 = vunpack.c.l.b16 %v168
    %v369 = vunpack.c.l.b16 %v169
    %v370 = vunpack.c.l.b16 %v170
    %v371 = vunpack.c.l.b16 %v171
    %v372 = vunpack.c.l.b16 %v172
    %v373 = vunpack.c.l.b16 %v173
    %v374 = vunpack.c.l.b16 %v174
    %v375 = vunpack.c.l.b16 %v175
    %v376 = vunpack.c.l.b16 %v176
    %v377 = vunpack.c.l.b16 %v177
    %v378 = vunpack.c.l.b16 %v178
    %v379 = vpack.c.b16 %v282, %v281
    %v380 = vpack.c.b16 %v284, %v283
    %v381 = vpack.c.b16 %v286, %v285
    %v382 = vpack.c.b16 %v288, %v287
    %v383 = vpack.c.b16 %v290, %v289
    %v384 = vpack.c.b16 %v292, %v291
    %v385 = vpack.c.b16 %v294, %v293
    %v386 = vpack.c.b16 %v296, %v295
    %v387 = vpack.c.b16 %v298, %v297
    %v388 = vpack.c.b16 %v300, %v299
    %v389 = vpack.c.b16 %v302, %v301
    %v390 = vpack.c.b16 %v304, %v303
    %v391 = vpack.c.b16 %v306, %v305
    %v392 = vpack.c.b16 %v308, %v307
    %v393 = vpack.c.b16 %v310, %v309
    %v394 = vpack.c.b16 %v312, %v311
    %v395 = vpack.c.b16 %v314, %v313
    %v396 = vpack.c.b16 %v316, %v315
    %v397 = vpack.c.b16 %v318, %v317
    %v398 = vpack.c.b16 %v320, %v319
    %v399 = vpack.c.b16 %v322, %v321
    %v400 = vpack.c.b16 %v324, %v323
    %v401 = vpack.c.b16 %v326, %v325
    %v402 = vpack.c.b16 %v328, %v327
    %v403 = vpack.c.b16 %v330, %v329
    %v404 = vpack.c.b16 %v332, %v331
    %v405 = vpack.c.b16 %v334, %v333
    %v406 = vpack.c.b16 %v336, %v335
    %v407 = vpack.c.b16 %v338, %v337
    %v408 = vpack.c.b16 %v340, %v339
    %v409 = vpack.c.b16 %v342, %v341
    %v410 = vpack.c.b16 %v344, %v343
    %v411 = vpack.c.b16 %v346, %v345
    %v412 = vpack.c.b16 %v348, %v347
    %v413 = vpack.c.b16 %v350, %v349
    %v414 = vpack.c.b16 %v352, %v351
    %v415 = vpack.c.b16 %v354, %v353
    %v416 = vpack.c.b16 %v356, %v355
    %v417 = vpack.c.b16 %v358, %v357
    %v418 = vpack.c.b16 %v360, %v359
    %v419 = vpack.c.b16 %v362, %v361
    %v420 = vpack.c.b16 %v364, %v363
    %v421 = vpack.c.b16 %v366, %v365
    %v422 = vpack.c.b16 %v368, %v367
    %v423 = vpack.c.b16 %v370, %v369
    %v424 = vpack.c.b16 %v372, %v371
    %v425 = vpack.c.b16 %v374, %v373
    %v426 = vpack.c.b16 %v376, %v375
    %v427 = vpack.c.b16 %v378, %v377
    %vm477 = vcmask 130048
    %v479 = vsel %vm477, %v80, 0
    %481 = vmatpush.bf16.msra.mxu0 %v386
    %482 = vmatpush.bf16.msra.mxu0 %v385
    %483 = vmatpush.bf16.msra.mxu0 %v384
    %484 = vmatpush.bf16.msra.mxu0 %v383
    %485 = vmatpush.bf16.msra.mxu0 %v382
    %486 = vmatpush.bf16.msra.mxu0 %v381
    %487 = vmatpush.bf16.msra.mxu0 %v380
    %488 = vmatpush.bf16.msra.mxu0 %v379
    %489 = vmatmul.bf16.gmra.mxu0 %v74
    %v490 = vpop.f32.mrf.mxu0
    %v491 = vadd.f32 %v181, %v490
    %v492 = vpop.f32.mrf.mxu0
    %v493 = vadd.f32 %v181, %v492
    %494 = vdwg.mxu0
    %495 = vmatpush.bf16.msra.mxu0 %v394
    %496 = vmatpush.bf16.msra.mxu0 %v393
    %497 = vmatpush.bf16.msra.mxu0 %v392
    %498 = vmatpush.bf16.msra.mxu0 %v391
    %499 = vmatpush.bf16.msra.mxu0 %v390
    %500 = vmatpush.bf16.msra.mxu0 %v389
    %501 = vmatpush.bf16.msra.mxu0 %v388
    %502 = vmatpush.bf16.msra.mxu0 %v387
    %503 = vmatmul.bf16.gmra.mxu0 %v75
    %v504 = vpop.f32.mrf.mxu0
    %v505 = vadd.f32 %v491, %v504
    %v506 = vpop.f32.mrf.mxu0
    %v507 = vadd.f32 %v493, %v506
    %508 = vdwg.mxu0
    %509 = vmatpush.bf16.msra.mxu0 %v402
    %510 = vmatpush.bf16.msra.mxu0 %v401
    %511 = vmatpush.bf16.msra.mxu0 %v400
    %512 = vmatpush.bf16.msra.mxu0 %v399
    %513 = vmatpush.bf16.msra.mxu0 %v398
    %514 = vmatpush.bf16.msra.mxu0 %v397
    %515 = vmatpush.bf16.msra.mxu0 %v396
    %516 = vmatpush.bf16.msra.mxu0 %v395
    %517 = vmatmul.bf16.gmra.mxu0 %v76
    %v518 = vpop.f32.mrf.mxu0
    %v519 = vadd.f32 %v505, %v518
    %v520 = vpop.f32.mrf.mxu0
    %v521 = vadd.f32 %v507, %v520
    %522 = vdwg.mxu0
    %523 = vmatpush.bf16.msra.mxu0 %v410
    %524 = vmatpush.bf16.msra.mxu0 %v409
    %525 = vmatpush.bf16.msra.mxu0 %v408
    %526 = vmatpush.bf16.msra.mxu0 %v407
    %527 = vmatpush.bf16.msra.mxu0 %v406
    %528 = vmatpush.bf16.msra.mxu0 %v405
    %529 = vmatpush.bf16.msra.mxu0 %v404
    %530 = vmatpush.bf16.msra.mxu0 %v403
    %531 = vmatmul.bf16.gmra.mxu0 %v77
    %v532 = vpop.f32.mrf.mxu0
    %v533 = vadd.f32 %v519, %v532
    %v534 = vpop.f32.mrf.mxu0
    %v535 = vadd.f32 %v521, %v534
    %536 = vdwg.mxu0
    %537 = vmatpush.bf16.msra.mxu0 %v418
    %538 = vmatpush.bf16.msra.mxu0 %v417
    %539 = vmatpush.bf16.msra.mxu0 %v416
    %540 = vmatpush.bf16.msra.mxu0 %v415
    %541 = vmatpush.bf16.msra.mxu0 %v414
    %542 = vmatpush.bf16.msra.mxu0 %v413
    %543 = vmatpush.bf16.msra.mxu0 %v412
    %544 = vmatpush.bf16.msra.mxu0 %v411
    %545 = vmatmul.bf16.gmra.mxu0 %v78
    %v546 = vpop.f32.mrf.mxu0
    %v547 = vadd.f32 %v533, %v546
    %v548 = vpop.f32.mrf.mxu0
    %v549 = vadd.f32 %v535, %v548
    %550 = vdwg.mxu0
    %551 = vmatpush.bf16.msra.mxu0 %v426
    %552 = vmatpush.bf16.msra.mxu0 %v425
    %553 = vmatpush.bf16.msra.mxu0 %v424
    %554 = vmatpush.bf16.msra.mxu0 %v423
    %555 = vmatpush.bf16.msra.mxu0 %v422
    %556 = vmatpush.bf16.msra.mxu0 %v421
    %557 = vmatpush.bf16.msra.mxu0 %v420
    %558 = vmatpush.bf16.msra.mxu0 %v419
    %559 = vmatmul.bf16.gmra.mxu0 %v79
    %v560 = vpop.f32.mrf.mxu0
    %v561 = vadd.f32 %v547, %v560
    %v562 = vpop.f32.mrf.mxu0
    %v563 = vadd.f32 %v549, %v562
    %564 = vdwg.mxu0
    %565 = vmatpush.bf16.msra.mxu0 0
    %566 = vmatpush.bf16.msra.mxu0 0
    %567 = vmatpush.bf16.msra.mxu0 0
    %568 = vmatpush.bf16.msra.mxu0 0
    %569 = vmatpush.bf16.msra.mxu0 0
    %570 = vmatpush.bf16.msra.mxu0 0
    %571 = vmatpush.bf16.msra.mxu0 0
    %572 = vmatpush.bf16.msra.mxu0 %v427
    %573 = vmatmul.bf16.gmra.mxu0 %v479
    %v574 = vpop.f32.mrf.mxu0
    %v575 = vadd.f32 %v561, %v574
    %v576 = vpop.f32.mrf.mxu0
    %v577 = vadd.f32 %v563, %v576
    %578 = vdwg.mxu0
    %v579 = vmax.f32 %v575, 0.0
    %v580 = vmax.f32 %v577, 0.0
    %v581 = vpack.c.bf16 %v580, %v579
    %v582 = vld [vmem:[%s3] sm:$0xf]
    %v583 = vld [vmem:[%s3 + $0x4] sm:$0xf]
    %v584 = vld [vmem:[%s3 + $0x8] sm:$0xf]
    %v585 = vld [vmem:[%s3 + $0xc] sm:$0xf]
    %v586 = vld [vmem:[%s3 + $0x10] sm:$0xf]
    %v587 = vld [vmem:[%s3 + $0x14] sm:$0xf]
    %v588 = vld [vmem:[%s3 + $0x18] sm:$0xf]
    %v589 = vld [vmem:[%s3 + $0x1c] sm:$0xf]
    %v590 = vld [vmem:[%s3 + $0x20] sm:$0xf]
    %v591 = vld [vmem:[%s3 + $0x24] sm:$0xf]
    %v592 = vld [vmem:[%s3 + $0x28] sm:$0xf]
    %v593 = vld [vmem:[%s3 + $0x2c] sm:$0xf]
    %v594 = vld [vmem:[%s3 + $0x30] sm:$0xf]
    %v595 = vld [vmem:[%s3 + $0x34] sm:$0xf]
    %v596 = vld [vmem:[%s3 + $0x38] sm:$0xf]
    %v597 = vld [vmem:[%s3 + $0x3c] sm:$0xf]
    %v598 = vld [vmem:[%s4] sm:$0x1]
    %v600 = vperm.slane %v598, 0
    %v618 = vunpack.c.l.b16 %v582
    %v619 = vunpack.c.l.b16 %v583
    %v620 = vunpack.c.l.b16 %v584
    %v621 = vunpack.c.l.b16 %v585
    %v622 = vunpack.c.l.b16 %v586
    %v623 = vunpack.c.l.b16 %v587
    %v624 = vunpack.c.l.b16 %v588
    %v625 = vunpack.c.l.b16 %v589
    %v626 = vunpack.c.l.b16 %v590
    %v627 = vunpack.c.l.b16 %v591
    %v628 = vunpack.c.l.b16 %v592
    %v629 = vunpack.c.l.b16 %v593
    %v630 = vunpack.c.l.b16 %v594
    %v631 = vunpack.c.l.b16 %v595
    %v632 = vunpack.c.l.b16 %v596
    %v633 = vunpack.c.l.b16 %v597
    %v634 = vpack.c.b16 %v619, %v618
    %v635 = vpack.c.b16 %v621, %v620
    %v636 = vpack.c.b16 %v623, %v622
    %v637 = vpack.c.b16 %v625, %v624
    %v638 = vpack.c.b16 %v627, %v626
    %v639 = vpack.c.b16 %v629, %v628
    %v640 = vpack.c.b16 %v631, %v630
    %v641 = vpack.c.b16 %v633, %v632
    %650 = vmatpush.bf16.msra.mxu0 %v641
    %651 = vmatpush.bf16.msra.mxu0 %v640
    %652 = vmatpush.bf16.msra.mxu0 %v639
    %653 = vmatpush.bf16.msra.mxu0 %v638
    %654 = vmatpush.bf16.msra.mxu0 %v637
    %655 = vmatpush.bf16.msra.mxu0 %v636
    %656 = vmatpush.bf16.msra.mxu0 %v635
    %657 = vmatpush.bf16.msra.mxu0 %v634
    %658 = vmatmul.bf16.gmra.mxu0 %v581
    %v659 = vpop.f32.mrf.mxu0
    %v660 = vadd.f32 %v600, %v659
    %v661 = vpop.f32.mrf.mxu0
    %v662 = vadd.f32 %v600, %v661
    %663 = vdwg.mxu0
    %v664 = vmax.f32 %v660, 0.0
    %v665 = vmax.f32 %v662, 0.0
    %v666 = vpack.c.bf16 %v665, %v664
    %v667 = vld [vmem:[%s5] sm:$0xf]
    %v668 = vld [vmem:[%s5 + $0x4] sm:$0xf]
    %v669 = vld [vmem:[%s5 + $0x8] sm:$0xf]
    %v670 = vld [vmem:[%s5 + $0xc] sm:$0xf]
    %v671 = vld [vmem:[%s5 + $0x10] sm:$0xf]
    %v672 = vld [vmem:[%s5 + $0x14] sm:$0xf]
    %v673 = vld [vmem:[%s5 + $0x18] sm:$0xf]
    %v674 = vld [vmem:[%s5 + $0x1c] sm:$0xf]
    %v675 = vld [vmem:[%s6] sm:$0x1]
    %v677 = vperm.slane %v675, 0
    %v687 = vunpack.c.l.b16 %v667
    %v688 = vunpack.c.l.b16 %v668
    %v689 = vunpack.c.l.b16 %v669
    %v690 = vunpack.c.l.b16 %v670
    %v691 = vunpack.c.l.b16 %v671
    %v692 = vunpack.c.l.b16 %v672
    %v693 = vunpack.c.l.b16 %v673
    %v694 = vunpack.c.l.b16 %v674
    %v695 = vpack.c.b16 %v688, %v687
    %v696 = vpack.c.b16 %v690, %v689
    %v697 = vpack.c.b16 %v692, %v691
    %v698 = vpack.c.b16 %v694, %v693
    %vm703 = vcmask 523264
    %v705 = vsel %vm703, %v666, 0
    %707 = vmatpush.bf16.msra.mxu0 0
    %708 = vmatpush.bf16.msra.mxu0 0
    %709 = vmatpush.bf16.msra.mxu0 0
    %710 = vmatpush.bf16.msra.mxu0 0
    %711 = vmatpush.bf16.msra.mxu0 %v698
    %712 = vmatpush.bf16.msra.mxu0 %v697
    %713 = vmatpush.bf16.msra.mxu0 %v696
    %714 = vmatpush.bf16.msra.mxu0 %v695
    %715 = vmatmul.bf16.gmra.mxu0 %v705
    %v716 = vpop.f32.mrf.mxu0
    %v717 = vadd.f32 %v677, %v716
    %v718 = vpop.f32.mrf.mxu0
    %v719 = vadd.f32 %v677, %v718
    %720 = vdwg.mxu0
    %721 = vmax.xlane.f32.xlu0 %v717
    %v722 = vpop.xlane.xlu0 %721
    %723 = vmax.xlane.f32.xlu0 %v719
    %v724 = vpop.xlane.xlu0 %723
    %v725 = vsub.f32 %v717, %v722
    %v726 = vsub.f32 %v719, %v724
    %v727 = vmul.f32 %v725, 1.442695
    %v728 = vpow.pop %v727
    %v729 = vmul.f32 %v726, 1.442695
    %v730 = vpow.pop %v729
    %731 = vadd.xlane.f32.xlu0 %v728
    %v732 = vpop.xlane.xlu0 %731
    %733 = vadd.xlane.f32.xlu0 %v730
    %v734 = vpop.xlane.xlu0 %733
    %v735 = vlog2.pop %v732
    %v736 = vmul.f32 %v735, 0.6931472
    %v737 = vlog2.pop %v734
    %v738 = vmul.f32 %v737, 0.6931472
    %v739 = vsub.f32 %v725, %v736
    %v740 = vsub.f32 %v726, %v738
    %v741 = vpack.c.bf16 %v739, %v739
    %v742 = vpack.c.bf16 %v740, %v740
    %743 = vst [vmem:[#allocation7] sm:$0xf] %v741
    %744 = vst [vmem:[#allocation7 + $0x4] sm:$0xf] %v742
    // Predicated region
    $region38: #{tpu_custom_call.1} parent=1 // pred_check
      _
    $region39: #{tpu_custom_call.1} parent=1 // pred_check_branch
      %746 = sbr.rel (0) target = $region41
    $region40: #{tpu_custom_call.1} parent=1 // pred_region
      %748 = vsyncadd [#allocation4], 0
      %s749 = sshll.u32 [#allocation7], 4
      %s750 = int_to_ptr.vmem [resolvable:$true] %s749
      %s751 = sshll.u32 %s7, 4
      %s752 = int_to_ptr.hbm [resolvable:$true] %s751
      %757 = dma.vmem_to_hbm [thread:$0]  %s750, 128, %s752, [#allocation4], 64, 64, 4
    $region41: #{tpu_custom_call.1} parent=1 // pred_fallthru
      _
    // Predicated region
    $region42: #{tpu_custom_call.1} parent=1 // pred_check
      _
    $region43: #{tpu_custom_call.1} parent=1 // pred_check_branch
      %759 = sbr.rel (0) target = $region45
    $region44: #{tpu_custom_call.1} parent=1 // pred_region
      %761 = dma.done [#allocation4], 128
    $region45: #{tpu_custom_call.1} parent=1 // pred_fallthru
      _
    %762 = vsyncpa [#allocation3], 1
    %763 = vsyncpa [#allocation6], 1
    %764 = vsyncpa [#allocation4], 1

</llo_original>
